<compile_context>
chip_gen: v7x
topology: tpu7x:2x2x1
jax: 0.10.0
libtpu: 0.0.40
codegen_flags: <defaults>
</compile_context>

<pallas_src>
import jax
import jax.numpy as jnp
from jax.experimental import pallas as pl
from jax.experimental.pallas import tpu as pltpu

BN_EPS = 1e-5


# --------------------------------------------------------------------------------------
# Pallas kernels
# --------------------------------------------------------------------------------------
def _stats_kernel(xc_ref, w_ref, s_ref, q_ref):
    """Pass 1: accumulate per-column sum / sum-of-squares of y = xcol @ wbig over M tiles.

    Outputs use a constant block index across the grid axis (accumulator pattern, P3)."""
    @pl.when(pl.program_id(0) == 0)
    def _init():
        s_ref[...] = jnp.zeros_like(s_ref)
        q_ref[...] = jnp.zeros_like(q_ref)

    # bf16 operands, f32 accumulation on the MXU.
    y = jnp.dot(xc_ref[...], w_ref[...], preferred_element_type=jnp.float32)
    s_ref[...] += jnp.sum(y, axis=0, keepdims=True)
    # NOTE: var = E[y^2] - mean^2 can cancel for large |mean|; fine for BN-scale
    # activations and all accumulation here is f32.
    q_ref[...] += jnp.sum(y * y, axis=0, keepdims=True)


def _apply_kernel(xc_ref, w_ref, scale_ref, shift_ref, o_ref):
    """Pass 2: y = xcol @ wbig (bf16 in / f32 acc), fused BN affine + ReLU, bf16 store."""
    y = jnp.dot(xc_ref[...], w_ref[...], preferred_element_type=jnp.float32)
    o_ref[...] = jnp.maximum(y * scale_ref[...] + shift_ref[...], 0.0).astype(o_ref.dtype)


# --------------------------------------------------------------------------------------
# Wrapper helpers
# --------------------------------------------------------------------------------------
def _pick_row_tile(m, max_rows=1024):
    """Largest multiple-of-8 divisor of m (<= max_rows), preferring >=2 tiles so the
    BlockSpec pipeline actually overlaps DMA with compute.  Falls back to m itself
    (block == full dim is always legal)."""
    cap = min(m // 2 if m >= 16 else m, max_rows)
    best = None
    for t in range(8, cap + 1, 8):
        if m % t == 0:
            best = t
    return best if best is not None else m


def _pack_weights(weight):
    """Conv2d weight (Cout, Cin, 5, 5) -> (9*Cin, 4*Cout).

    Row block   s = 3*(du+1) + (dv+1)  : shift (du, dv) of the pre-upsample x.
    Column block t = 2*a + b           : parity (a, b) of the output pixel (2p+a, 2q+b).
    Entry is K[o, c, i, j] with i = 2*du + 2 - a, j = 2*dv + 2 - b (zero if out of the
    5x5 range) — the polyphase decomposition of zero-insert-upsample + 5x5 conv."""
    cout, cin = weight.shape[0], weight.shape[1]
    w_hwio = jnp.transpose(weight, (2, 3, 1, 0))            # (5, 5, Cin, Cout)
    zeros = jnp.zeros((cin, cout), weight.dtype)
    rows = []
    for du in (-1, 0, 1):
        for dv in (-1, 0, 1):
            cols = []
            for a in (0, 1):
                for b in (0, 1):
                    i = 2 * du + 2 - a
                    j = 2 * dv + 2 - b
                    cols.append(w_hwio[i, j] if (0 <= i < 5 and 0 <= j < 5) else zeros)
            rows.append(jnp.concatenate(cols, axis=1))      # (Cin, 4*Cout)
    return jnp.concatenate(rows, axis=0)                    # (9*Cin, 4*Cout)


# --------------------------------------------------------------------------------------
# Public forward
# --------------------------------------------------------------------------------------
def upconv_block(x_nchw, weight, gamma, beta, *, eps=BN_EPS,
                 out_dtype=jnp.bfloat16, max_tile_rows=1024):
    """UpConvBlock forward: unpool(2x zero-insert) -> Conv2d 5x5 pad2 (no bias)
    -> BatchNorm2d (training batch stats) -> ReLU.  Returns NCHW (N, Cout, 2H, 2W)."""
    N, Cin, H, W = x_nchw.shape
    Cout = weight.shape[0]
    assert weight.shape == (Cout, Cin, 5, 5)
    M = N * H * W
    Kc = 9 * Cin
    Co4 = 4 * Cout

    # ---- im2col of the SMALL pre-upsample input (3x3 shift neighborhood on channels).
    # This is a cheap pass over the tiny input tensor; the heavy (4x-larger) output side
    # stays fully inside the kernels.
    x_nhwc = jnp.transpose(x_nchw, (0, 2, 3, 1))
    xp = jnp.pad(x_nhwc, ((0, 0), (1, 1), (1, 1), (0, 0)))
    cols = [xp[:, du + 1:du + 1 + H, dv + 1:dv + 1 + W, :]
            for du in (-1, 0, 1) for dv in (-1, 0, 1)]
    xcol = jnp.concatenate(cols, axis=-1).reshape(M, Kc).astype(jnp.bfloat16)

    wbig = _pack_weights(weight).astype(jnp.bfloat16)       # (Kc, Co4), bf16 operands

    tm = _pick_row_tile(M, max_tile_rows)
    num_tiles = M // tm

    # ---- pass 1: per-column batch statistics of y, accumulated across M tiles ----------
    col_sum, col_sq = pl.pallas_call(
        _stats_kernel,
        out_shape=(jax.ShapeDtypeStruct((1, Co4), jnp.float32),
                   jax.ShapeDtypeStruct((1, Co4), jnp.float32)),
        grid=(num_tiles,),
        in_specs=[pl.BlockSpec((tm, Kc), lambda i: (i, 0)),
                  pl.BlockSpec((Kc, Co4), lambda i: (0, 0))],
        out_specs=(pl.BlockSpec((1, Co4), lambda i: (0, 0)),
                   pl.BlockSpec((1, Co4), lambda i: (0, 0))),
        compiler_params=pltpu.CompilerParams(dimension_semantics=("arbitrary",)),
    )(xcol, wbig)

    # ---- fold BN batch stats + gamma/beta into per-column scale/shift (tiny f32 math) --
    cnt = jnp.float32(4 * M)                 # BN reduces over N * 2H * 2W = 4*M samples
    ch_sum = col_sum.reshape(4, Cout).sum(axis=0)
    ch_sq = col_sq.reshape(4, Cout).sum(axis=0)
    mean = ch_sum / cnt
    var = ch_sq / cnt - mean * mean          # biased variance (PyTorch BN normalization)
    inv = jax.lax.rsqrt(var + eps)
    scale = gamma.astype(jnp.float32) * inv
    shift = beta.astype(jnp.float32) - mean * scale
    scale_col = jnp.tile(scale, 4).reshape(1, Co4)           # column t*Cout+o -> scale[o]
    shift_col = jnp.tile(shift, 4).reshape(1, Co4)

    # ---- pass 2: fused matmul + BN affine + ReLU, lane-dense bf16 output ----------------
    out_flat = pl.pallas_call(
        _apply_kernel,
        out_shape=jax.ShapeDtypeStruct((M, Co4), out_dtype),
        grid=(num_tiles,),
        in_specs=[pl.BlockSpec((tm, Kc), lambda i: (i, 0)),
                  pl.BlockSpec((Kc, Co4), lambda i: (0, 0)),
                  pl.BlockSpec((1, Co4), lambda i: (0, 0)),
                  pl.BlockSpec((1, Co4), lambda i: (0, 0))],
        out_specs=pl.BlockSpec((tm, Co4), lambda i: (i, 0)),
        compiler_params=pltpu.CompilerParams(dimension_semantics=("parallel",)),
    )(xcol, wbig, scale_col, shift_col)

    # ---- epilogue: (M, 4*Cout) [rows=(n,p,q), cols=(a,b,o)] -> NCHW ----------------------
    # Only a single bf16 channels-last -> channels-first transpose remains (required to
    # match the PyTorch NCHW return layout); skip it if the consumer accepts NHWC.
    out = out_flat.reshape(N, H, W, 2, 2, Cout)              # [n, p, q, a, b, o]
    out = jnp.transpose(out, (0, 5, 1, 3, 2, 4))             # [n, o, p, a, q, b]
    return out.reshape(N, Cout, 2 * H, 2 * W)


# --------------------------------------------------------------------------------------
# Pure-JAX reference (exact UpConvBlock semantics)
# --------------------------------------------------------------------------------------
def _reference(x_nchw, weight, gamma, beta, eps=BN_EPS):
    N, Cin, H, W = x_nchw.shape
    Cout = weight.shape[0]
    z = jnp.zeros((N, Cin, 2 * H, 2 * W), x_nchw.dtype).at[:, :, ::2, ::2].set(x_nchw)
    y = jax.lax.conv_general_dilated(
        z, weight, window_strides=(1, 1), padding=((2, 2), (2, 2)),
        dimension_numbers=("NCHW", "OIHW", "NCHW"),
        precision=jax.lax.Precision.HIGHEST)
    mean = jnp.mean(y, axis=(0, 2, 3), keepdims=True)
    var = jnp.mean((y - mean) ** 2, axis=(0, 2, 3), keepdims=True)   # biased
    y = (y - mean) * jax.lax.rsqrt(var + eps)
    y = y * gamma.reshape(1, Cout, 1, 1) + beta.reshape(1, Cout, 1, 1)
    return jnp.maximum(y, 0.0)


if __name__ == "__main__":
    key = jax.random.PRNGKey(0)
    k_x, k_w, k_g, k_b = jax.random.split(key, 4)

    # Small shapes consistent with the module; Cout=32 makes the kernel output width
    # 4*Cout = 128 (fully lane-dense stores).
    N, Cin, Cout, H, W = 2, 4, 32, 16, 16
    x = jax.random.normal(k_x, (N, Cin, H, W), dtype=jnp.float32)
    weight = 0.1 * jax.random.normal(k_w, (Cout, Cin, 5, 5), dtype=jnp.float32)
    gamma = 1.0 + 0.1 * jax.random.normal(k_g, (Cout,), dtype=jnp.float32)
    beta = 0.1 * jax.random.normal(k_b, (Cout,), dtype=jnp.float32)

    out = jax.block_until_ready(upconv_block(x, weight, gamma, beta))
    assert out.shape == (N, Cout, 2 * H, 2 * W)
    assert out.dtype == jnp.bfloat16

    # Reference on bf16-rounded operands (kernel matmul uses bf16 inputs / f32 accum);
    # the output itself is bf16, so compare at bf16-level tolerance.
    xq = x.astype(jnp.bfloat16).astype(jnp.float32)
    wq = weight.astype(jnp.bfloat16).astype(jnp.float32)
    ref = jax.block_until_ready(_reference(xq, wq, gamma, beta))
    err = float(jnp.max(jnp.abs(out.astype(jnp.float32) - ref)))
    assert jnp.allclose(out.astype(jnp.float32), ref, atol=2e-2, rtol=2e-2), err

    print("KERNEL_OK")
</pallas_src>

<mosaic_0001>
module attributes {stable_mosaic.version = 11 : i64} {
  func.func @_stats_kernel(%arg0: i32, %arg1: memref<256x36xbf16, #tpu.memory_space<vmem>>, %arg2: memref<36x128xbf16, #tpu.memory_space<vmem>>, %arg3: memref<1x128xf32, #tpu.memory_space<vmem>>, %arg4: memref<1x128xf32, #tpu.memory_space<vmem>>) attributes {dimension_semantics = [#tpu.dimension_semantics<arbitrary>], iteration_bounds = array<i64: 2>, scalar_prefetch = 0 : i64, scratch_operands = 0 : i64, tpu.core_type = #tpu.core_type<tc>, window_params = [{transform_indices = @transform_0, window_bounds = array<i64: 256, 36>}, {pipeline_mode = #tpu.pipeline_mode<synchronous>, transform_indices = @transform_1, window_bounds = array<i64: 36, 128>}, {pipeline_mode = #tpu.pipeline_mode<synchronous>, transform_indices = @transform_2, window_bounds = array<i64: 1, 128>}, {pipeline_mode = #tpu.pipeline_mode<synchronous>, transform_indices = @transform_3, window_bounds = array<i64: 1, 128>}]} {
    %c0_i32 = arith.constant 0 : i32
    %0 = arith.cmpi eq, %arg0, %c0_i32 : i32
    %1 = arith.extui %0 : i1 to i32
    %c0_i32_0 = arith.constant 0 : i32
    %2 = arith.cmpi ne, %1, %c0_i32_0 : i32
    scf.if %2 {
      %cst_14 = arith.constant 0.000000e+00 : f32
      %17 = vector.broadcast %cst_14 : f32 to vector<1x128xf32>
      %c0_15 = arith.constant 0 : index
      %c0_16 = arith.constant 0 : index
      %18 = vector.load %arg3[%c0_15, %c0_16] : memref<1x128xf32, #tpu.memory_space<vmem>>, vector<1x128xf32>
      tpu.vector_store %arg3[%c0_15, %c0_16], %17 {strides = array<i32>} : memref<1x128xf32, #tpu.memory_space<vmem>>, vector<1x128xf32>,
      %cst_17 = arith.constant 0.000000e+00 : f32
      %19 = vector.broadcast %cst_17 : f32 to vector<1x128xf32>
      %c0_18 = arith.constant 0 : index
      %c0_19 = arith.constant 0 : index
      %20 = vector.load %arg4[%c0_18, %c0_19] : memref<1x128xf32, #tpu.memory_space<vmem>>, vector<1x128xf32>
      tpu.vector_store %arg4[%c0_18, %c0_19], %19 {strides = array<i32>} : memref<1x128xf32, #tpu.memory_space<vmem>>, vector<1x128xf32>,
    } else {
    }
    %c0 = arith.constant 0 : index
    %c0_1 = arith.constant 0 : index
    %3 = vector.load %arg1[%c0, %c0_1] : memref<256x36xbf16, #tpu.memory_space<vmem>>, vector<256x36xbf16>
    %c0_2 = arith.constant 0 : index
    %c0_3 = arith.constant 0 : index
    %4 = vector.load %arg2[%c0_2, %c0_3] : memref<36x128xbf16, #tpu.memory_space<vmem>>, vector<36x128xbf16>
    %cst = arith.constant dense<0.000000e+00> : vector<256x128xf32>
    %5 = tpu.matmul %3, %4, %cst {dimension_numbers = #tpu.dot_dimension_numbers<[1], [0], [0], [1], [0, 0, 1, 1], [], []>} : vector<256x36xbf16>, vector<36x128xbf16>, vector<256x128xf32> -> vector<256x128xf32>
    %c0_4 = arith.constant 0 : index
    %c0_5 = arith.constant 0 : index
    %6 = vector.load %arg3[%c0_4, %c0_5] : memref<1x128xf32, #tpu.memory_space<vmem>>, vector<1x128xf32>
    %cst_6 = arith.constant dense<0.000000e+00> : vector<128xf32>
    %7 = vector.multi_reduction <add>, %5, %cst_6 [0] : vector<256x128xf32> to vector<128xf32>
    %8 = vector.shape_cast %7 : vector<128xf32> to vector<1x128xf32>
    %9 = arith.addf %6, %8 : vector<1x128xf32>
    %c0_7 = arith.constant 0 : index
    %c0_8 = arith.constant 0 : index
    %10 = vector.load %arg3[%c0_7, %c0_8] : memref<1x128xf32, #tpu.memory_space<vmem>>, vector<1x128xf32>
    tpu.vector_store %arg3[%c0_7, %c0_8], %9 {strides = array<i32>} : memref<1x128xf32, #tpu.memory_space<vmem>>, vector<1x128xf32>,
    %c0_9 = arith.constant 0 : index
    %c0_10 = arith.constant 0 : index
    %11 = vector.load %arg4[%c0_9, %c0_10] : memref<1x128xf32, #tpu.memory_space<vmem>>, vector<1x128xf32>
    %12 = arith.mulf %5, %5 : vector<256x128xf32>
    %cst_11 = arith.constant dense<0.000000e+00> : vector<128xf32>
    %13 = vector.multi_reduction <add>, %12, %cst_11 [0] : vector<256x128xf32> to vector<128xf32>
    %14 = vector.shape_cast %13 : vector<128xf32> to vector<1x128xf32>
    %15 = arith.addf %11, %14 : vector<1x128xf32>
    %c0_12 = arith.constant 0 : index
    %c0_13 = arith.constant 0 : index
    %16 = vector.load %arg4[%c0_12, %c0_13] : memref<1x128xf32, #tpu.memory_space<vmem>>, vector<1x128xf32>
    tpu.vector_store %arg4[%c0_12, %c0_13], %15 {strides = array<i32>} : memref<1x128xf32, #tpu.memory_space<vmem>>, vector<1x128xf32>,
    return
  }
  func.func @transform_0(%arg0: i32) -> (i32, i32) {
    %c0_i32 = arith.constant 0 : i32
    %c0_i32_0 = arith.constant 0 : i32
    return %arg0, %c0_i32 : i32, i32
  }
  func.func @transform_1(%arg0: i32) -> (i32, i32) {
    %c0_i32 = arith.constant 0 : i32
    %c0_i32_0 = arith.constant 0 : i32
    %c0_i32_1 = arith.constant 0 : i32
    return %c0_i32, %c0_i32_0 : i32, i32
  }
  func.func @transform_2(%arg0: i32) -> (i32, i32) {
    %c0_i32 = arith.constant 0 : i32
    %c0_i32_0 = arith.constant 0 : i32
    %c0_i32_1 = arith.constant 0 : i32
    return %c0_i32, %c0_i32_0 : i32, i32
  }
  func.func @transform_3(%arg0: i32) -> (i32, i32) {
    %c0_i32 = arith.constant 0 : i32
    %c0_i32_0 = arith.constant 0 : i32
    %c0_i32_1 = arith.constant 0 : i32
    return %c0_i32, %c0_i32_0 : i32, i32
  }
}

</mosaic_0001>

<llo_original>
// kernel: tpu_custom_call.1
$region0: #{tpu_custom_call.1}
  #allocation0 [shape = 'u32[]', space=smem, size = 0x4, offset = 0x4, fixed_abs, tag = 'smem constant byte address 0x4 - core index']
  #allocation1 [shape = 'u32[144,128]{1,0:T(1,128)}', space=vmem, size = 0x12000, scoped, tag = 'internal scratch']
  %s0 = inlined_call_operand.vmem [shape: bf16[512,36], index: 0, kind: input, shape index: {}]
  %s1 = inlined_call_operand.vmem [shape: bf16[36,128], index: 1, kind: input, shape index: {}]
  %s2 = inlined_call_operand.hbm [shape: f32[1,128], index: 2, kind: output, shape index: {0}]
  %s3 = inlined_call_operand.hbm [shape: f32[1,128], index: 3, kind: output, shape index: {1}]
  %4 = xla_tuple %s2, %s3
  %s5 = sld [smem:[#allocation0]]
  $region53: #{tpu_custom_call.1} parent=0
    _
  %s7 = ssub.s32 1, %s5
  %s8 = scalar_select 0, %s7, %s5
  $region1: #{tpu_custom_call.1} parent=0
    #allocation2 [shape = 'u8[512]{0}', space=vmem, size = 0x400, scoped, tag = 'output window, operand 0, single buffered']
    #allocation3 [shape = 's32[2]{0}', space=sflag, size = 0x8, scoped, tag = 'scoped memory for tpu_custom_call.1']
    #allocation4 [shape = 'u8[512]{0}', space=vmem, size = 0x400, scoped, tag = 'output window, operand 1, single buffered']
    #allocation5 [shape = 's32[1]{0}', space=sflag, size = 0x4, scoped, tag = 'scoped memory for tpu_custom_call.1']
    %9 = vsyncpa [#allocation3], 0
    %10 = vsyncpa [#allocation5], 0
    loop: start=0, step=1, limit=4
    $region2: #{tpu_custom_call.1} parent=1 // loop_pre_header
      _
    $region3: #{tpu_custom_call.1} parent=1 // loop_header
      %s12 = sphi 0, %s16
      %p13 = scmp.ge.s32.totalorder %s12, 4
      %s22 = sphi 0, %s24
      %s25 = sphi 0, %s22
      %s26 = sphi 0, %s25
      %s42 = sphi 0, %s26
      %s46 = sphi 0, %s46
      %s48 = sphi 0, %s46
      %s49 = sphi 0, %s48
      %s63 = sphi 0, %s49
      %s67 = sphi 0, %s67
      %s69 = sphi 0, %s67
      %s70 = sphi 0, %s69
      %s84 = sphi 0, %s70
      %s88 = sphi 0, %s88
      %s90 = sphi 0, %s88
      %s91 = sphi 0, %s90
      %s105 = sphi 0, %s91
    $region4: #{tpu_custom_call.1} parent=1 // loop_header_branch
      %15 = sbr.rel (%p13) target = $region8
    $region5: #{tpu_custom_call.1} parent=1 // loop_body
      %s17 = ssub.s32 %s12, 1
      %s18 = ssub.s32 %s12, 2
      %s19 = sadd.s32 %s12, 1
      %s20 = ssub.s32 %s12, %s19
      %p21 = scmp.eq.s32.totalorder %s20, 0
      %s23 = sadd.s32 %s22, 1
      %s24 = scalar_select %p21, %s22, %s23
      %p27 = pneg %p21
      %p28 = scmp.eq.s32.totalorder %s12, 1
      %p29 = por %p27, %p28
      %p30 = scmp.ne.s32.totalorder %s22, %s25
      %p31 = scmp.eq.s32.totalorder %s12, 0
      %p32 = por %p30, %p31
      %p33 = scmp.ne.s32.totalorder %s22, %s25
      %p34 = scmp.eq.s32.totalorder %s17, 1
      %p35 = por %p33, %p34
      %p36 = scmp.ne.s32.totalorder %s25, %s26
      %p37 = scmp.eq.s32.totalorder %s17, 0
      %p38 = por %p36, %p37
      %p39 = scmp.ne.s32.totalorder %s25, %s26
      %p40 = scmp.eq.s32.totalorder %s18, 1
      %p41 = por %p39, %p40
      %p43 = scmp.ne.s32.totalorder %s26, %s42
      %p44 = scmp.eq.s32.totalorder %s18, 0
      %p45 = por %p43, %p44
      %s47 = sadd.s32 %s46, 1
      %p50 = scmp.eq.s32.totalorder %s12, 1
      %p51 = scmp.ne.s32.totalorder %s46, %s48
      %p52 = scmp.eq.s32.totalorder %s12, 0
      %p53 = por %p51, %p52
      %p54 = scmp.ne.s32.totalorder %s46, %s48
      %p55 = scmp.eq.s32.totalorder %s17, 1
      %p56 = por %p54, %p55
      %p57 = scmp.ne.s32.totalorder %s48, %s49
      %p58 = scmp.eq.s32.totalorder %s17, 0
      %p59 = por %p57, %p58
      %p60 = scmp.ne.s32.totalorder %s48, %s49
      %p61 = scmp.eq.s32.totalorder %s18, 1
      %p62 = por %p60, %p61
      %p64 = scmp.ne.s32.totalorder %s49, %s63
      %p65 = scmp.eq.s32.totalorder %s18, 0
      %p66 = por %p64, %p65
      %s68 = sadd.s32 %s67, 1
      %p71 = scmp.eq.s32.totalorder %s12, 1
      %p72 = scmp.ne.s32.totalorder %s67, %s69
      %p73 = scmp.eq.s32.totalorder %s12, 0
      %p74 = por %p72, %p73
      %p75 = scmp.ne.s32.totalorder %s67, %s69
      %p76 = scmp.eq.s32.totalorder %s17, 1
      %p77 = por %p75, %p76
      %p78 = scmp.ne.s32.totalorder %s69, %s70
      %p79 = scmp.eq.s32.totalorder %s17, 0
      %p80 = por %p78, %p79
      %p81 = scmp.ne.s32.totalorder %s69, %s70
      %p82 = scmp.eq.s32.totalorder %s18, 1
      %p83 = por %p81, %p82
      %p85 = scmp.ne.s32.totalorder %s70, %s84
      %p86 = scmp.eq.s32.totalorder %s18, 0
      %p87 = por %p85, %p86
      %s89 = sadd.s32 %s88, 1
      %p92 = scmp.eq.s32.totalorder %s12, 1
      %p93 = scmp.ne.s32.totalorder %s88, %s90
      %p94 = scmp.eq.s32.totalorder %s12, 0
      %p95 = por %p93, %p94
      %p96 = scmp.ne.s32.totalorder %s88, %s90
      %p97 = scmp.eq.s32.totalorder %s17, 1
      %p98 = por %p96, %p97
      %p99 = scmp.ne.s32.totalorder %s90, %s91
      %p100 = scmp.eq.s32.totalorder %s17, 0
      %p101 = por %p99, %p100
      %p102 = scmp.ne.s32.totalorder %s90, %s91
      %p103 = scmp.eq.s32.totalorder %s18, 1
      %p104 = por %p102, %p103
      %p106 = scmp.ne.s32.totalorder %s91, %s105
      %p107 = scmp.eq.s32.totalorder %s18, 0
      %p108 = por %p106, %p107
      %p109 = scmp.le.s32.totalorder 1, %s12
      %p110 = scmp.lt.s32.totalorder %s12, 3
      %p111 = pnand %p109, %p110
      %p112 = pneg %p111
      // Predicated region
      $region9: #{tpu_custom_call.1} parent=5 // pred_check
        _
      $region10: #{tpu_custom_call.1} parent=5 // pred_check_branch
        %114 = sbr.rel (%p111) target = $region12
      $region11: #{tpu_custom_call.1} parent=5 // pred_region
        %s115 = ssub.s32 %s12, 1
        // Predicated region
        $region13: #{tpu_custom_call.1} parent=11 // pred_check
          %p116 = pneg %p59
        $region14: #{tpu_custom_call.1} parent=11 // pred_check_branch
          %118 = sbr.rel (%p116) target = $region16
        $region15: #{tpu_custom_call.1} parent=11 // pred_region
          _
        $region16: #{tpu_custom_call.1} parent=11 // pred_fallthru
          _
      $region12: #{tpu_custom_call.1} parent=5 // pred_fallthru
        _
      %p119 = scmp.lt.s32.totalorder %s12, 2
      // Predicated region
      $region17: #{tpu_custom_call.1} parent=5 // pred_check
        %p120 = pneg %p119
      $region18: #{tpu_custom_call.1} parent=5 // pred_check_branch
        %122 = sbr.rel (%p120) target = $region20
      $region19: #{tpu_custom_call.1} parent=5 // pred_region
        // Predicated region
        $region21: #{tpu_custom_call.1} parent=19 // pred_check
          %p123 = pneg %p32
        $region22: #{tpu_custom_call.1} parent=19 // pred_check_branch
          %125 = sbr.rel (%p123) target = $region24
        $region23: #{tpu_custom_call.1} parent=19 // pred_region
          %s126 = smul.u32 32, %s12
          %p127 = scmp.lt.s32.totalorder %s126, 63
          %s128 = scalar_select %p127, %s126, 63
          %s129 = smul.addr %s128, 4
          %s130 = scalar_lea.vmem %s0, %s129
          %s131 = smul.u32 32, %s12
        $region24: #{tpu_custom_call.1} parent=19 // pred_fallthru
          _
      $region20: #{tpu_custom_call.1} parent=5 // pred_fallthru
        _
      %p132 = scmp.le.s32.totalorder 1, %s12
      %p133 = scmp.lt.s32.totalorder %s12, 3
      %p134 = pnand %p132, %p133
      %p135 = pneg %p134
      // Predicated region
      $region25: #{tpu_custom_call.1} parent=5 // pred_check
        _
      $region26: #{tpu_custom_call.1} parent=5 // pred_check_branch
        %137 = sbr.rel (%p134) target = $region28
      $region27: #{tpu_custom_call.1} parent=5 // pred_region
        %s138 = ssub.s32 %s12, 1
        %s139 = smul.u32 32, %s17
        %p140 = scmp.lt.s32.totalorder %s139, 63
        %s141 = scalar_select %p140, %s139, 63
        %s142 = smul.addr %s141, 4
        %s143 = scalar_lea.vmem %s0, %s142
        %p144 = pneg %p38
        %p145 = pneg %p35
        %p146 = pneg %p59
        %p147 = pneg %p56
        %p148 = pneg %p80
        %p149 = pneg %p77
        %p150 = pneg %p101
        %p151 = pneg %p98
        %s152 = smul.u32 32, %s17
        %p153 = scmp.lt.s32.totalorder %s152, 63
        %s154 = scalar_select %p153, %s152, 63
        %s155 = smul.addr %s154, 4
        %s156 = scalar_lea.vmem %s0, %s155
        %s157 = smul.u32 32, %s17
        %p159 = scmp.eq.s32.totalorder %s17, 0
        // Predicated region
        $region29: #{tpu_custom_call.1} parent=27 // pred_check
          %p160 = pneg %p159
        $region30: #{tpu_custom_call.1} parent=27 // pred_check_branch
          %162 = sbr.rel (%p160) target = $region32
        $region31: #{tpu_custom_call.1} parent=27 // pred_region
          %163 = vst [vmem:[#allocation2] sm:$0x1] 0.0
          %164 = vst [vmem:[#allocation4] sm:$0x1] 0.0
        $region32: #{tpu_custom_call.1} parent=27 // pred_fallthru
          _
        %v165 = vld [vmem:[%s156] sm:$0xf]
        %v166 = vld [vmem:[%s156 + $0x4] sm:$0xf]
        %v167 = vld [vmem:[%s156 + $0x8] sm:$0xf]
        %v168 = vld [vmem:[%s156 + $0xc] sm:$0xf]
        %v169 = vld [vmem:[%s156 + $0x10] sm:$0xf]
        %v170 = vld [vmem:[%s156 + $0x14] sm:$0xf]
        %v171 = vld [vmem:[%s156 + $0x18] sm:$0xf]
        %v172 = vld [vmem:[%s156 + $0x1c] sm:$0xf]
        %v173 = vld [vmem:[%s156 + $0x20] sm:$0xf]
        %v174 = vld [vmem:[%s156 + $0x24] sm:$0xf]
        %v175 = vld [vmem:[%s156 + $0x28] sm:$0xf]
        %v176 = vld [vmem:[%s156 + $0x2c] sm:$0xf]
        %v177 = vld [vmem:[%s156 + $0x30] sm:$0xf]
        %v178 = vld [vmem:[%s156 + $0x34] sm:$0xf]
        %v179 = vld [vmem:[%s156 + $0x38] sm:$0xf]
        %v180 = vld [vmem:[%s156 + $0x3c] sm:$0xf]
        %v181 = vld [vmem:[%s156 + $0x40] sm:$0xf]
        %v182 = vld [vmem:[%s156 + $0x44] sm:$0xf]
        %v183 = vld [vmem:[%s156 + $0x48] sm:$0xf]
        %v184 = vld [vmem:[%s156 + $0x4c] sm:$0xf]
        %v185 = vld [vmem:[%s156 + $0x50] sm:$0xf]
        %v186 = vld [vmem:[%s156 + $0x54] sm:$0xf]
        %v187 = vld [vmem:[%s156 + $0x58] sm:$0xf]
        %v188 = vld [vmem:[%s156 + $0x5c] sm:$0xf]
        %v189 = vld [vmem:[%s156 + $0x60] sm:$0xf]
        %v190 = vld [vmem:[%s156 + $0x64] sm:$0xf]
        %v191 = vld [vmem:[%s156 + $0x68] sm:$0xf]
        %v192 = vld [vmem:[%s156 + $0x6c] sm:$0xf]
        %v193 = vld [vmem:[%s156 + $0x70] sm:$0xf]
        %v194 = vld [vmem:[%s156 + $0x74] sm:$0xf]
        %v195 = vld [vmem:[%s156 + $0x78] sm:$0xf]
        %v196 = vld [vmem:[%s156 + $0x7c] sm:$0xf]
        %v197 = vld [vmem:[%s1] sm:$0xf]
        %v198 = vld [vmem:[%s1 + $0x4] sm:$0xf]
        %v199 = vld [vmem:[%s1 + $0x8] sm:$0xf]
        %v200 = vld [vmem:[%s1 + $0xc] sm:$0xf]
        %v201 = vld [vmem:[%s1 + $0x10] sm:$0x3]
        %v234 = vunpack.c.l.b16 %v165
        %v235 = vunpack.c.l.b16 %v166
        %v236 = vunpack.c.l.b16 %v167
        %v237 = vunpack.c.l.b16 %v168
        %v238 = vunpack.c.l.b16 %v169
        %v239 = vunpack.c.l.b16 %v170
        %v240 = vunpack.c.l.b16 %v171
        %v241 = vunpack.c.l.b16 %v172
        %v242 = vunpack.c.l.b16 %v173
        %v243 = vunpack.c.l.b16 %v174
        %v244 = vunpack.c.l.b16 %v175
        %v245 = vunpack.c.l.b16 %v176
        %v246 = vunpack.c.l.b16 %v177
        %v247 = vunpack.c.l.b16 %v178
        %v248 = vunpack.c.l.b16 %v179
        %v249 = vunpack.c.l.b16 %v180
        %v250 = vunpack.c.l.b16 %v181
        %v251 = vunpack.c.l.b16 %v182
        %v252 = vunpack.c.l.b16 %v183
        %v253 = vunpack.c.l.b16 %v184
        %v254 = vunpack.c.l.b16 %v185
        %v255 = vunpack.c.l.b16 %v186
        %v256 = vunpack.c.l.b16 %v187
        %v257 = vunpack.c.l.b16 %v188
        %v258 = vunpack.c.l.b16 %v189
        %v259 = vunpack.c.l.b16 %v190
        %v260 = vunpack.c.l.b16 %v191
        %v261 = vunpack.c.l.b16 %v192
        %v262 = vunpack.c.l.b16 %v193
        %v263 = vunpack.c.l.b16 %v194
        %v264 = vunpack.c.l.b16 %v195
        %v265 = vunpack.c.l.b16 %v196
        %v266 = vpack.c.b16 %v235, %v234
        %v267 = vpack.c.b16 %v237, %v236
        %v268 = vpack.c.b16 %v239, %v238
        %v269 = vpack.c.b16 %v241, %v240
        %v270 = vpack.c.b16 %v243, %v242
        %v271 = vpack.c.b16 %v245, %v244
        %v272 = vpack.c.b16 %v247, %v246
        %v273 = vpack.c.b16 %v249, %v248
        %v274 = vpack.c.b16 %v251, %v250
        %v275 = vpack.c.b16 %v253, %v252
        %v276 = vpack.c.b16 %v255, %v254
        %v277 = vpack.c.b16 %v257, %v256
        %v278 = vpack.c.b16 %v259, %v258
        %v279 = vpack.c.b16 %v261, %v260
        %v280 = vpack.c.b16 %v263, %v262
        %v281 = vpack.c.b16 %v265, %v264
        %v287 = vunpack.c.l.b16 %v197
        %v288 = vunpack.c.l.b16 %v198
        %v289 = vunpack.c.l.b16 %v199
        %v290 = vunpack.c.l.b16 %v200
        %v291 = vunpack.c.l.b16 %v201
        %v292 = vpack.c.b16 %v288, %v287
        %v293 = vpack.c.b16 %v290, %v289
        %v294 = vpack.c.b16 %v291, %v291
        %vm297 = vcmask 293888
        %v299 = vsel %vm297, %v266, 0
        %v302 = vsel %vm297, %v267, 0
        %v305 = vsel %vm297, %v268, 0
        %v308 = vsel %vm297, %v269, 0
        %v311 = vsel %vm297, %v270, 0
        %v314 = vsel %vm297, %v271, 0
        %v317 = vsel %vm297, %v272, 0
        %v320 = vsel %vm297, %v273, 0
        %v323 = vsel %vm297, %v274, 0
        %v326 = vsel %vm297, %v275, 0
        %v329 = vsel %vm297, %v276, 0
        %v332 = vsel %vm297, %v277, 0
        %v335 = vsel %vm297, %v278, 0
        %v338 = vsel %vm297, %v279, 0
        %v341 = vsel %vm297, %v280, 0
        %v344 = vsel %vm297, %v281, 0
        %vm346 = vcmask 1041408
        %v348 = vsel %vm346, %v294, 0
        %350 = vmatprep.subr.bf16.mxu0 0
        %351 = vmatpush1.bf16.msra.mxu0 %v292
        %352 = vmatprep.subr.bf16.mxu0 0
        %353 = vmatpush1.bf16.msra.mxu0 %v293
        %354 = vmatprep.subr.bf16.mxu0 0
        %355 = vmatpush1.bf16.msra.mxu0 %v348
        %356 = vmatprep.subr.bf16.mxu0 0
        %357 = vmatpush1.bf16.msra.mxu0 0
        %358 = vmatprep.subr.bf16.mxu0 0
        %359 = vmatpush1.bf16.msra.mxu0 0
        %360 = vmatprep.subr.bf16.mxu0 0
        %361 = vmatpush1.bf16.msra.mxu0 0
        %362 = vmatprep.subr.bf16.mxu0 0
        %363 = vmatpush1.bf16.msra.mxu0 0
        %364 = vmatprep.subr.bf16.mxu0 0
        %365 = vmatpush1.bf16.msra.mxu0 0
        %366 = vmatprep.subr.bf16.mxu0 0
        %367 = vmatpush1.bf16.msra.mxu0 0
        %368 = vmatprep.subr.bf16.mxu0 0
        %369 = vmatpush1.bf16.msra.mxu0 0
        %370 = vmatprep.subr.bf16.mxu0 0
        %371 = vmatpush1.bf16.msra.mxu0 0
        %372 = vmatprep.subr.bf16.mxu0 0
        %373 = vmatpush1.bf16.msra.mxu0 0
        %374 = vmatprep.subr.bf16.mxu0 0
        %375 = vmatpush1.bf16.msra.mxu0 0
        %376 = vmatprep.subr.bf16.mxu0 0
        %377 = vmatpush1.bf16.msra.mxu0 0
        %378 = vmatprep.subr.bf16.mxu0 0
        %379 = vmatpush1.bf16.msra.mxu0 0
        %380 = vmatprep.subr.bf16.mxu0 0
        %381 = vmatpush1.bf16.msra.mxu0 0
        %382 = vmatprep.mubr.bf16.mxu0 0
        %383 = vmatmul.mubr.bf16.gmra.mrb[0].mxu0 %v299
        %v384 = vpop.f32.mrb[0].mxu0
        %v385 = vadd.f32 0.0, %v384
        %v386 = vpop.f32.mrb[0].mxu0
        %v387 = vpop.f32.mrb[0].mxu0
        %v388 = vadd.f32 0.0, %v387
        %v389 = vpop.f32.mrb[0].mxu0
        %390 = vmatprep.mubr.bf16.mxu0 0
        %391 = vmatmul.mubr.bf16.gmra.mrb[0].mxu0 %v302
        %v392 = vpop.f32.mrb[0].mxu0
        %v393 = vadd.f32 0.0, %v392
        %v394 = vpop.f32.mrb[0].mxu0
        %v395 = vpop.f32.mrb[0].mxu0
        %v396 = vadd.f32 0.0, %v395
        %v397 = vpop.f32.mrb[0].mxu0
        %398 = vmatprep.mubr.bf16.mxu0 0
        %399 = vmatmul.mubr.bf16.gmra.mrb[0].mxu0 %v305
        %v400 = vpop.f32.mrb[0].mxu0
        %v401 = vadd.f32 0.0, %v400
        %v402 = vpop.f32.mrb[0].mxu0
        %v403 = vpop.f32.mrb[0].mxu0
        %v404 = vadd.f32 0.0, %v403
        %v405 = vpop.f32.mrb[0].mxu0
        %406 = vmatprep.mubr.bf16.mxu0 0
        %407 = vmatmul.mubr.bf16.gmra.mrb[0].mxu0 %v308
        %v408 = vpop.f32.mrb[0].mxu0
        %v409 = vadd.f32 0.0, %v408
        %v410 = vpop.f32.mrb[0].mxu0
        %v411 = vpop.f32.mrb[0].mxu0
        %v412 = vadd.f32 0.0, %v411
        %v413 = vpop.f32.mrb[0].mxu0
        %414 = vmatprep.mubr.bf16.mxu0 0
        %415 = vmatmul.mubr.bf16.gmra.mrb[0].mxu0 %v311
        %v416 = vpop.f32.mrb[0].mxu0
        %v417 = vadd.f32 0.0, %v416
        %v418 = vpop.f32.mrb[0].mxu0
        %v419 = vpop.f32.mrb[0].mxu0
        %v420 = vadd.f32 0.0, %v419
        %v421 = vpop.f32.mrb[0].mxu0
        %422 = vmatprep.mubr.bf16.mxu0 0
        %423 = vmatmul.mubr.bf16.gmra.mrb[0].mxu0 %v314
        %v424 = vpop.f32.mrb[0].mxu0
        %v425 = vadd.f32 0.0, %v424
        %v426 = vpop.f32.mrb[0].mxu0
        %v427 = vpop.f32.mrb[0].mxu0
        %v428 = vadd.f32 0.0, %v427
        %v429 = vpop.f32.mrb[0].mxu0
        %430 = vmatprep.mubr.bf16.mxu0 0
        %431 = vmatmul.mubr.bf16.gmra.mrb[0].mxu0 %v317
        %v432 = vpop.f32.mrb[0].mxu0
        %v433 = vadd.f32 0.0, %v432
        %v434 = vpop.f32.mrb[0].mxu0
        %v435 = vpop.f32.mrb[0].mxu0
        %v436 = vadd.f32 0.0, %v435
        %v437 = vpop.f32.mrb[0].mxu0
        %438 = vmatprep.mubr.bf16.mxu0 0
        %439 = vmatmul.mubr.bf16.gmra.mrb[0].mxu0 %v320
        %v440 = vpop.f32.mrb[0].mxu0
        %v441 = vadd.f32 0.0, %v440
        %v442 = vpop.f32.mrb[0].mxu0
        %v443 = vpop.f32.mrb[0].mxu0
        %v444 = vadd.f32 0.0, %v443
        %v445 = vpop.f32.mrb[0].mxu0
        %446 = vmatprep.mubr.bf16.mxu0 0
        %447 = vmatmul.mubr.bf16.gmra.mrb[0].mxu0 %v323
        %v448 = vpop.f32.mrb[0].mxu0
        %v449 = vadd.f32 0.0, %v448
        %v450 = vpop.f32.mrb[0].mxu0
        %v451 = vpop.f32.mrb[0].mxu0
        %v452 = vadd.f32 0.0, %v451
        %v453 = vpop.f32.mrb[0].mxu0
        %454 = vmatprep.mubr.bf16.mxu0 0
        %455 = vmatmul.mubr.bf16.gmra.mrb[0].mxu0 %v326
        %v456 = vpop.f32.mrb[0].mxu0
        %v457 = vadd.f32 0.0, %v456
        %v458 = vpop.f32.mrb[0].mxu0
        %v459 = vpop.f32.mrb[0].mxu0
        %v460 = vadd.f32 0.0, %v459
        %v461 = vpop.f32.mrb[0].mxu0
        %462 = vmatprep.mubr.bf16.mxu0 0
        %463 = vmatmul.mubr.bf16.gmra.mrb[0].mxu0 %v329
        %v464 = vpop.f32.mrb[0].mxu0
        %v465 = vadd.f32 0.0, %v464
        %v466 = vpop.f32.mrb[0].mxu0
        %v467 = vpop.f32.mrb[0].mxu0
        %v468 = vadd.f32 0.0, %v467
        %v469 = vpop.f32.mrb[0].mxu0
        %470 = vmatprep.mubr.bf16.mxu0 0
        %471 = vmatmul.mubr.bf16.gmra.mrb[0].mxu0 %v332
        %v472 = vpop.f32.mrb[0].mxu0
        %v473 = vadd.f32 0.0, %v472
        %v474 = vpop.f32.mrb[0].mxu0
        %v475 = vpop.f32.mrb[0].mxu0
        %v476 = vadd.f32 0.0, %v475
        %v477 = vpop.f32.mrb[0].mxu0
        %478 = vmatprep.mubr.bf16.mxu0 0
        %479 = vmatmul.mubr.bf16.gmra.mrb[0].mxu0 %v335
        %v480 = vpop.f32.mrb[0].mxu0
        %v481 = vadd.f32 0.0, %v480
        %v482 = vpop.f32.mrb[0].mxu0
        %v483 = vpop.f32.mrb[0].mxu0
        %v484 = vadd.f32 0.0, %v483
        %v485 = vpop.f32.mrb[0].mxu0
        %486 = vmatprep.mubr.bf16.mxu0 0
        %487 = vmatmul.mubr.bf16.gmra.mrb[0].mxu0 %v338
        %v488 = vpop.f32.mrb[0].mxu0
        %v489 = vadd.f32 0.0, %v488
        %v490 = vpop.f32.mrb[0].mxu0
        %v491 = vpop.f32.mrb[0].mxu0
        %v492 = vadd.f32 0.0, %v491
        %v493 = vpop.f32.mrb[0].mxu0
        %494 = vmatprep.mubr.bf16.mxu0 0
        %495 = vmatmul.mubr.bf16.gmra.mrb[0].mxu0 %v341
        %v496 = vpop.f32.mrb[0].mxu0
        %v497 = vadd.f32 0.0, %v496
        %v498 = vpop.f32.mrb[0].mxu0
        %v499 = vpop.f32.mrb[0].mxu0
        %v500 = vadd.f32 0.0, %v499
        %v501 = vpop.f32.mrb[0].mxu0
        %502 = vmatprep.mubr.bf16.mxu0 0
        %503 = vmatmul.mubr.bf16.gmra.mrb[0].mxu0 %v344
        %v504 = vpop.f32.mrb[0].mxu0
        %v505 = vadd.f32 0.0, %v504
        %v506 = vpop.f32.mrb[0].mxu0
        %v507 = vpop.f32.mrb[0].mxu0
        %v508 = vadd.f32 0.0, %v507
        %v509 = vpop.f32.mrb[0].mxu0
        %510 = vdwg.mxu0
        %v511 = vld [vmem:[#allocation2] sm:$0x1]
        %v512 = vadd.f32 %v385, %v388
        %v513 = vadd.f32 %v512, %v393
        %v514 = vadd.f32 %v513, %v396
        %v515 = vadd.f32 %v514, %v401
        %v516 = vadd.f32 %v515, %v404
        %v517 = vadd.f32 %v516, %v409
        %v518 = vadd.f32 %v517, %v412
        %v519 = vadd.f32 %v518, %v417
        %v520 = vadd.f32 %v519, %v420
        %v521 = vadd.f32 %v520, %v425
        %v522 = vadd.f32 %v521, %v428
        %v523 = vadd.f32 %v522, %v433
        %v524 = vadd.f32 %v523, %v436
        %v525 = vadd.f32 %v524, %v441
        %v526 = vadd.f32 %v525, %v444
        %v527 = vadd.f32 %v526, %v449
        %v528 = vadd.f32 %v527, %v452
        %v529 = vadd.f32 %v528, %v457
        %v530 = vadd.f32 %v529, %v460
        %v531 = vadd.f32 %v530, %v465
        %v532 = vadd.f32 %v531, %v468
        %v533 = vadd.f32 %v532, %v473
        %v534 = vadd.f32 %v533, %v476
        %v535 = vadd.f32 %v534, %v481
        %v536 = vadd.f32 %v535, %v484
        %v537 = vadd.f32 %v536, %v489
        %v538 = vadd.f32 %v537, %v492
        %v539 = vadd.f32 %v538, %v497
        %v540 = vadd.f32 %v539, %v500
        %v541 = vadd.f32 %v540, %v505
        %v542 = vadd.f32 %v541, %v508
        %v543 = vrot.slane %v542, 4
        %v544 = vadd.f32 %v542, %v543
        %v545 = vrot.slane %v544, 2
        %v546 = vadd.f32 %v544, %v545
        %v547 = vrot.slane %v546, 1
        %v548 = vadd.f32 %v546, %v547
        %v549 = vadd.f32 %v511, %v548
        %550 = vst [vmem:[#allocation2] sm:$0x1] %v549
        %v551 = vld [vmem:[#allocation4] sm:$0x1]
        %v552 = vmul.f32 %v385, %v385
        %v553 = vmul.f32 %v388, %v388
        %v554 = vmul.f32 %v393, %v393
        %v555 = vmul.f32 %v396, %v396
        %v556 = vmul.f32 %v401, %v401
        %v557 = vmul.f32 %v404, %v404
        %v558 = vmul.f32 %v409, %v409
        %v559 = vmul.f32 %v412, %v412
        %v560 = vmul.f32 %v417, %v417
        %v561 = vmul.f32 %v420, %v420
        %v562 = vmul.f32 %v425, %v425
        %v563 = vmul.f32 %v428, %v428
        %v564 = vmul.f32 %v433, %v433
        %v565 = vmul.f32 %v436, %v436
        %v566 = vmul.f32 %v441, %v441
        %v567 = vmul.f32 %v444, %v444
        %v568 = vmul.f32 %v449, %v449
        %v569 = vmul.f32 %v452, %v452
        %v570 = vmul.f32 %v457, %v457
        %v571 = vmul.f32 %v460, %v460
        %v572 = vmul.f32 %v465, %v465
        %v573 = vmul.f32 %v468, %v468
        %v574 = vmul.f32 %v473, %v473
        %v575 = vmul.f32 %v476, %v476
        %v576 = vmul.f32 %v481, %v481
        %v577 = vmul.f32 %v484, %v484
        %v578 = vmul.f32 %v489, %v489
        %v579 = vmul.f32 %v492, %v492
        %v580 = vmul.f32 %v497, %v497
        %v581 = vmul.f32 %v500, %v500
        %v582 = vmul.f32 %v505, %v505
        %v583 = vmul.f32 %v508, %v508
        %v584 = vadd.f32 %v552, %v553
        %v585 = vadd.f32 %v584, %v554
        %v586 = vadd.f32 %v585, %v555
        %v587 = vadd.f32 %v586, %v556
        %v588 = vadd.f32 %v587, %v557
        %v589 = vadd.f32 %v588, %v558
        %v590 = vadd.f32 %v589, %v559
        %v591 = vadd.f32 %v590, %v560
        %v592 = vadd.f32 %v591, %v561
        %v593 = vadd.f32 %v592, %v562
        %v594 = vadd.f32 %v593, %v563
        %v595 = vadd.f32 %v594, %v564
        %v596 = vadd.f32 %v595, %v565
        %v597 = vadd.f32 %v596, %v566
        %v598 = vadd.f32 %v597, %v567
        %v599 = vadd.f32 %v598, %v568
        %v600 = vadd.f32 %v599, %v569
        %v601 = vadd.f32 %v600, %v570
        %v602 = vadd.f32 %v601, %v571
        %v603 = vadd.f32 %v602, %v572
        %v604 = vadd.f32 %v603, %v573
        %v605 = vadd.f32 %v604, %v574
        %v606 = vadd.f32 %v605, %v575
        %v607 = vadd.f32 %v606, %v576
        %v608 = vadd.f32 %v607, %v577
        %v609 = vadd.f32 %v608, %v578
        %v610 = vadd.f32 %v609, %v579
        %v611 = vadd.f32 %v610, %v580
        %v612 = vadd.f32 %v611, %v581
        %v613 = vadd.f32 %v612, %v582
        %v614 = vadd.f32 %v613, %v583
        %v615 = vrot.slane %v614, 4
        %v616 = vadd.f32 %v614, %v615
        %v617 = vrot.slane %v616, 2
        %v618 = vadd.f32 %v616, %v617
        %v619 = vrot.slane %v618, 1
        %v620 = vadd.f32 %v618, %v619
        %v621 = vadd.f32 %v551, %v620
        %622 = vst [vmem:[#allocation4] sm:$0x1] %v621
        // Predicated region
        $region33: #{tpu_custom_call.1} parent=27 // pred_check
          %p623 = pneg %p77
        $region34: #{tpu_custom_call.1} parent=27 // pred_check_branch
          %625 = sbr.rel (%p623) target = $region36
        $region35: #{tpu_custom_call.1} parent=27 // pred_region
          %s627 = ssub.s32 16, 16
          %628 = vsyncadd [#allocation3], %s627
          %s630 = sshll.u32 [#allocation2], 4
          %s631 = int_to_ptr.vmem [resolvable:$true] %s630
          %633 = dma.vmem_to_hbm [thread:$0]  %s631, 16, %s2, [#allocation3]
        $region36: #{tpu_custom_call.1} parent=27 // pred_fallthru
          _
        // Predicated region
        $region37: #{tpu_custom_call.1} parent=27 // pred_check
          %p634 = pneg %p98
        $region38: #{tpu_custom_call.1} parent=27 // pred_check_branch
          %636 = sbr.rel (%p634) target = $region40
        $region39: #{tpu_custom_call.1} parent=27 // pred_region
          %s638 = ssub.s32 16, 16
          %639 = vsyncadd [#allocation5], %s638
          %s641 = sshll.u32 [#allocation4], 4
          %s642 = int_to_ptr.vmem [resolvable:$true] %s641
          %644 = dma.vmem_to_hbm [thread:$0]  %s642, 16, %s3, [#allocation5]
        $region40: #{tpu_custom_call.1} parent=27 // pred_fallthru
          _
        // Predicated region
        $region41: #{tpu_custom_call.1} parent=27 // pred_check
          %p645 = pneg %p77
        $region42: #{tpu_custom_call.1} parent=27 // pred_check_branch
          %647 = sbr.rel (%p645) target = $region44
        $region43: #{tpu_custom_call.1} parent=27 // pred_region
          %648 = dma.done [#allocation3], 16
        $region44: #{tpu_custom_call.1} parent=27 // pred_fallthru
          _
        // Predicated region
        $region45: #{tpu_custom_call.1} parent=27 // pred_check
          %p649 = pneg %p98
        $region46: #{tpu_custom_call.1} parent=27 // pred_check_branch
          %651 = sbr.rel (%p649) target = $region48
        $region47: #{tpu_custom_call.1} parent=27 // pred_region
          %652 = dma.done [#allocation5], 16
        $region48: #{tpu_custom_call.1} parent=27 // pred_fallthru
          _
      $region28: #{tpu_custom_call.1} parent=5 // pred_fallthru
        _
      %p653 = scmp.le.s32.totalorder 2, %s12
      // Predicated region
      $region49: #{tpu_custom_call.1} parent=5 // pred_check
        %p654 = pneg %p653
      $region50: #{tpu_custom_call.1} parent=5 // pred_check_branch
        %656 = sbr.rel (%p654) target = $region52
      $region51: #{tpu_custom_call.1} parent=5 // pred_region
        %s657 = ssub.s32 %s12, 2
      $region52: #{tpu_custom_call.1} parent=5 // pred_fallthru
        _
    $region6: #{tpu_custom_call.1} parent=1 // loop_footer
      %s16 = sadd.s32 1, %s12
    $region7: #{tpu_custom_call.1} parent=1 // loop_footer_branch
      %11 = sbr.rel target = $region3
    $region8: #{tpu_custom_call.1} parent=1 // loop_exit
      _
    %658 = vsyncpa [#allocation3], 1
    %s659 = scalar_lea.sflag [#allocation3], 1
    %660 = vsyncpa %s659, 1
    %661 = vsyncpa [#allocation5], 1

</llo_original>
